<compile_context>
chip_gen: v7x
topology: tpu7x:2x2x1
jax: 0.10.0
libtpu: 0.0.40
codegen_flags: <defaults>
</compile_context>

<pallas_src>
import math

import jax
import jax.numpy as jnp
from jax.experimental import pallas as pl
from jax.experimental.pallas import tpu as pltpu


_MXU_MIN_CONTRACTION = 32  # below this a matmul wastes the MXU tile; use the VPU


def _channel_mix(w, x):
    """(O, C) @ (C, T) -> (O, T) accumulated in f32.

    Large C: MXU matmul with native-dtype operands and f32 accumulation.
    Tiny C:  unrolled VPU broadcast-multiply-accumulate (skips the MXU).
    """
    c = w.shape[1]
    if c < _MXU_MIN_CONTRACTION:
        wf = w.astype(jnp.float32)
        xf = x.astype(jnp.float32)
        acc = wf[:, 0:1] * xf[0:1, :]
        for i in range(1, c):
            acc = acc + wf[:, i:i + 1] * xf[i:i + 1, :]
        return acc
    # Native operand dtype on the MXU (no explicit f32 upcast of operands);
    # f32 accumulation via preferred_element_type only.
    return jnp.dot(w, x.astype(w.dtype), preferred_element_type=jnp.float32)


def _tuner_block_kernel(x_ref, w1_ref, b1_ref, w2_ref, b2_ref, o_ref):
    # x_ref : (C_in, tT)    w1_ref: (C_mid, C_in)   b1_ref: (C_mid, 1)
    # o_ref : (C_out, tT)   w2_ref: (C_out, C_mid)  b2_ref: (C_out, 1)
    h = _channel_mix(w1_ref[...], x_ref[...])                   # f32 (C_mid, tT)
    h = jnp.maximum(h + b1_ref[...].astype(jnp.float32), 0.0)   # bias + ReLU (VPU)
    y = _channel_mix(w2_ref[...], h)                            # f32 (C_out, tT)
    y = y + b2_ref[...].astype(jnp.float32)
    o_ref[...] = y.astype(o_ref.dtype)


def _vmem_budget_bytes():
    """~70% of this chip's physical VMEM (fallback: assume v7x's 64 MiB/TC)."""
    try:
        cap = int(pltpu.get_tpu_info().vmem_capacity_bytes)
    except Exception:
        cap = 64 * 1024 * 1024
    return min(int(cap * 0.70), 96 * 1024 * 1024)


def _vmem_footprint(tile_t, c_in, c_mid, c_out, x_isz, w_isz, o_isz,
                    io_buffers=2, weight_buffers=2):
    """Explicit per-step VMEM footprint: tiles x buffers + weights x buffers
    + in-kernel f32 intermediates."""
    tiles = io_buffers * tile_t * (c_in * x_isz + c_out * o_isz)
    weights = weight_buffers * w_isz * (c_mid * c_in + c_out * c_mid + c_mid + c_out)
    live_f32 = 4 * tile_t * (c_in + c_mid + c_out)
    return tiles + weights + live_f32


def _choose_tile_t(T, footprint, budget, max_tile=4096):
    """Largest lane tile (multiple of 128, or the full T) whose footprint fits."""
    if T <= 128 or (T <= max_tile and footprint(T) <= budget):
        return T  # block dim == full array dim is always legal
    tile = max(128, min(max_tile, (T // 128) * 128))
    while tile > 128 and footprint(tile) > budget:
        tile -= 128
    return tile


def _build_call(B, C_in, C_mid, C_out, T, tile_t, out_dtype, vmem_limit, cost,
                single_buffer_weights):
    # Constant-index operands never change across grid steps -> a single buffer
    # is enough; reclaims VMEM for larger lane tiles (matters most on v7x).
    w_kwargs = {"pipeline_mode": pl.Buffered(1)} if single_buffer_weights else {}

    # Long T-tile axis first so the v7x megacore split lands on it, not on a
    # possibly tiny batch axis. Both axes are independent -> "parallel".
    grid = (pl.cdiv(T, tile_t), B)

    # Leading size-1 batch dim uses None (== pl.Squeezed()): kernel refs are
    # plain (C, tile_t) tiles, channels on sublanes, T on lanes (lane-dense).
    in_specs = [
        pl.BlockSpec((None, C_in, tile_t), lambda t, b: (b, 0, t)),
        pl.BlockSpec((C_mid, C_in), lambda t, b: (0, 0), **w_kwargs),
        pl.BlockSpec((C_mid, 1), lambda t, b: (0, 0), **w_kwargs),
        pl.BlockSpec((C_out, C_mid), lambda t, b: (0, 0), **w_kwargs),
        pl.BlockSpec((C_out, 1), lambda t, b: (0, 0), **w_kwargs),
    ]
    out_specs = pl.BlockSpec((None, C_out, tile_t), lambda t, b: (b, 0, t))

    return pl.pallas_call(
        _tuner_block_kernel,
        out_shape=jax.ShapeDtypeStruct((B, C_out, T), out_dtype),
        grid_spec=pltpu.PrefetchScalarGridSpec(
            num_scalar_prefetch=0,
            grid=grid,
            in_specs=in_specs,
            out_specs=out_specs,
        ),
        compiler_params=pltpu.CompilerParams(
            dimension_semantics=("parallel", "parallel"),
            vmem_limit_bytes=int(vmem_limit),
        ),
        cost_estimate=cost,
    )


def tuner_block(x, w1, b1, w2, b2, *, tile_t=None):
    """TunerBlock forward for x: (B, C_in, T), kernel_size=1 pointwise convs.

    w1: (C_mid, C_in), b1: (C_mid,), w2: (C_out, C_mid), b2: (C_out,).
    """
    # TODO(synk): kernel_size > 1 (padding=k//2) would need halo exchange across
    # T tiles; only the module's default kernel_size=1 is implemented here.
    assert x.ndim == 3
    B, C_in, T = x.shape
    C_mid, C_out = w1.shape[0], w2.shape[0]
    assert w1.shape == (C_mid, C_in) and w2.shape == (C_out, C_mid)

    b1 = b1.reshape(C_mid, 1)
    b2 = b2.reshape(C_out, 1)

    x_isz = jnp.dtype(x.dtype).itemsize
    w_isz = jnp.dtype(w1.dtype).itemsize
    budget = _vmem_budget_bytes()

    def footprint(t):
        return _vmem_footprint(t, C_in, C_mid, C_out, x_isz, w_isz, x_isz)

    if tile_t is None:
        tile_t = _choose_tile_t(T, footprint, budget)

    # Explicit scoped-VMEM limit derived from the footprint (with slack), so
    # large tiles are not throttled by the 16/32 MiB defaults.
    vmem_limit = max(int(footprint(tile_t) * 5 // 4), 32 * 1024 * 1024)

    cost = pl.CostEstimate(
        flops=2 * B * T * (C_in * C_mid + C_mid * C_out),
        transcendentals=0,
        bytes_accessed=(B * T * (C_in + C_out) * x_isz
                        + (C_mid * C_in + C_out * C_mid + C_mid + C_out) * w_isz),
    )

    args = (x, w1, b1, w2, b2)
    common = (B, C_in, C_mid, C_out, T, tile_t, x.dtype, vmem_limit, cost)
    try:
        return _build_call(*common, single_buffer_weights=True)(*args)
    except Exception:
        # pipeline_mode=pl.Buffered(1) not supported by this jax/Mosaic build;
        # fall back to default double-buffered weight blocks (same numerics).
        return _build_call(*common, single_buffer_weights=False)(*args)


def tuner_block_ref(x, w1, b1, w2, b2):
    """Pure-JAX (f32) reference mirroring the PyTorch forward (kernel_size=1)."""
    xf = x.astype(jnp.float32)
    h = jnp.einsum("mc,bct->bmt", w1.astype(jnp.float32), xf)
    h = jnp.maximum(h + b1.reshape(1, -1, 1).astype(jnp.float32), 0.0)
    y = jnp.einsum("om,bmt->bot", w2.astype(jnp.float32), h)
    return y + b2.reshape(1, -1, 1).astype(jnp.float32)


if __name__ == "__main__":
    key = jax.random.PRNGKey(0)

    # --- Case 1: tiny module-default shapes (exercises the small-C VPU path) ---
    B, C_in, C_mid, C_out, T = 2, 4, 8, 4, 16
    kx, kw1, kw2, key = jax.random.split(key, 4)
    x = jax.random.normal(kx, (B, C_in, T), dtype=jnp.float32)
    bound = math.sqrt(6.0 / C_in)  # kaiming_uniform bound, fan_in = C_in * k
    w1 = jax.random.uniform(kw1, (C_mid, C_in), minval=-bound, maxval=bound,
                            dtype=jnp.float32)
    b1 = jnp.zeros((C_mid,), jnp.float32)
    # conv2 is zero-init in the module; use small random values so the
    # correctness check against the reference is non-trivial.
    w2 = 0.1 * jax.random.normal(kw2, (C_out, C_mid), dtype=jnp.float32)
    b2 = jnp.zeros((C_out,), jnp.float32)

    out = jax.block_until_ready(tuner_block(x, w1, b1, w2, b2))
    ref = tuner_block_ref(x, w1, b1, w2, b2)
    assert out.shape == (B, C_out, T)
    assert jnp.allclose(out, ref, atol=1e-5, rtol=1e-5), "small-C mismatch vs reference"

    # --- Case 2: bf16 with larger channels (exercises the native-bf16 MXU path) ---
    B, C_in, C_mid, C_out, T = 2, 64, 128, 64, 256
    kx, kw1, kw2, key = jax.random.split(key, 4)
    x = jax.random.normal(kx, (B, C_in, T), dtype=jnp.float32).astype(jnp.bfloat16)
    bound = math.sqrt(6.0 / C_in)
    w1 = jax.random.uniform(kw1, (C_mid, C_in), minval=-bound, maxval=bound,
                            dtype=jnp.float32).astype(jnp.bfloat16)
    b1 = jnp.zeros((C_mid,), jnp.bfloat16)
    w2 = (0.05 * jax.random.normal(kw2, (C_out, C_mid), dtype=jnp.float32)
          ).astype(jnp.bfloat16)
    b2 = jnp.zeros((C_out,), jnp.bfloat16)

    out = jax.block_until_ready(tuner_block(x, w1, b1, w2, b2))
    ref = tuner_block_ref(x, w1, b1, w2, b2)
    assert out.shape == (B, C_out, T)
    # bf16 operands (f32 accumulation) vs f32 reference: loose tolerance.
    assert jnp.allclose(out.astype(jnp.float32), ref, atol=5e-2, rtol=5e-2), \
        "bf16 MXU-path mismatch vs reference"

    print("KERNEL_OK")
</pallas_src>

<mosaic_0001>
module attributes {stable_mosaic.version = 11 : i64} {
  func.func @_tuner_block_kernel(%arg0: i32, %arg1: i32, %arg2: memref<1x4x16xf32, #tpu.memory_space<vmem>>, %arg3: memref<8x4xf32, #tpu.memory_space<vmem>>, %arg4: memref<8x1xf32, #tpu.memory_space<vmem>>, %arg5: memref<4x8xf32, #tpu.memory_space<vmem>>, %arg6: memref<4x1xf32, #tpu.memory_space<vmem>>, %arg7: memref<1x4x16xf32, #tpu.memory_space<vmem>>) attributes {dimension_semantics = [#tpu.dimension_semantics<parallel>, #tpu.dimension_semantics<parallel>], iteration_bounds = array<i64: 1, 2>, scalar_prefetch = 0 : i64, scratch_operands = 0 : i64, tpu.core_type = #tpu.core_type<tc>, window_params = [{transform_indices = @transform_0, window_bounds = array<i64: 1, 4, 16>}, {pipeline_mode = #tpu.pipeline_mode<synchronous>, transform_indices = @transform_1, window_bounds = array<i64: 8, 4>}, {pipeline_mode = #tpu.pipeline_mode<synchronous>, transform_indices = @transform_2, window_bounds = array<i64: 8, 1>}, {pipeline_mode = #tpu.pipeline_mode<synchronous>, transform_indices = @transform_3, window_bounds = array<i64: 4, 8>}, {pipeline_mode = #tpu.pipeline_mode<synchronous>, transform_indices = @transform_4, window_bounds = array<i64: 4, 1>}, {transform_indices = @transform_5, window_bounds = array<i64: 1, 4, 16>}]} {
    %c0 = arith.constant 0 : index
    %c0_0 = arith.constant 0 : index
    %0 = vector.load %arg3[%c0, %c0_0] : memref<8x4xf32, #tpu.memory_space<vmem>>, vector<8x4xf32>
    %c0_1 = arith.constant 0 : index
    %c0_2 = arith.constant 0 : index
    %c0_3 = arith.constant 0 : index
    %1 = vector.load %arg2[%c0_1, %c0_2, %c0_3] : memref<1x4x16xf32, #tpu.memory_space<vmem>>, vector<1x4x16xf32>
    %2 = vector.shape_cast %1 : vector<1x4x16xf32> to vector<4x16xf32>
    %3 = vector.extract_strided_slice %0 {offsets = [0, 0], sizes = [8, 1], strides = [1, 1]} : vector<8x4xf32> to vector<8x1xf32>
    %4 = vector.extract_strided_slice %2 {offsets = [0, 0], sizes = [1, 16], strides = [1, 1]} : vector<4x16xf32> to vector<1x16xf32>
    %5 = vector.broadcast %3 : vector<8x1xf32> to vector<8x16xf32>
    %6 = vector.broadcast %4 : vector<1x16xf32> to vector<8x16xf32>
    %7 = arith.mulf %5, %6 : vector<8x16xf32>
    %8 = vector.extract_strided_slice %0 {offsets = [0, 1], sizes = [8, 1], strides = [1, 1]} : vector<8x4xf32> to vector<8x1xf32>
    %9 = vector.extract_strided_slice %2 {offsets = [1, 0], sizes = [1, 16], strides = [1, 1]} : vector<4x16xf32> to vector<1x16xf32>
    %10 = vector.broadcast %8 : vector<8x1xf32> to vector<8x16xf32>
    %11 = vector.broadcast %9 : vector<1x16xf32> to vector<8x16xf32>
    %12 = arith.mulf %10, %11 : vector<8x16xf32>
    %13 = arith.addf %7, %12 : vector<8x16xf32>
    %14 = vector.extract_strided_slice %0 {offsets = [0, 2], sizes = [8, 1], strides = [1, 1]} : vector<8x4xf32> to vector<8x1xf32>
    %15 = vector.extract_strided_slice %2 {offsets = [2, 0], sizes = [1, 16], strides = [1, 1]} : vector<4x16xf32> to vector<1x16xf32>
    %16 = vector.broadcast %14 : vector<8x1xf32> to vector<8x16xf32>
    %17 = vector.broadcast %15 : vector<1x16xf32> to vector<8x16xf32>
    %18 = arith.mulf %16, %17 : vector<8x16xf32>
    %19 = arith.addf %13, %18 : vector<8x16xf32>
    %20 = vector.extract_strided_slice %0 {offsets = [0, 3], sizes = [8, 1], strides = [1, 1]} : vector<8x4xf32> to vector<8x1xf32>
    %21 = vector.extract_strided_slice %2 {offsets = [3, 0], sizes = [1, 16], strides = [1, 1]} : vector<4x16xf32> to vector<1x16xf32>
    %22 = vector.broadcast %20 : vector<8x1xf32> to vector<8x16xf32>
    %23 = vector.broadcast %21 : vector<1x16xf32> to vector<8x16xf32>
    %24 = arith.mulf %22, %23 : vector<8x16xf32>
    %25 = arith.addf %19, %24 : vector<8x16xf32>
    %c0_4 = arith.constant 0 : index
    %c0_5 = arith.constant 0 : index
    %26 = vector.load %arg4[%c0_4, %c0_5] : memref<8x1xf32, #tpu.memory_space<vmem>>, vector<8x1xf32>
    %27 = vector.broadcast %26 : vector<8x1xf32> to vector<8x16xf32>
    %28 = arith.addf %25, %27 : vector<8x16xf32>
    %cst = arith.constant 0.000000e+00 : f32
    %29 = vector.broadcast %cst : f32 to vector<8x16xf32>
    %30 = arith.maximumf %28, %29 : vector<8x16xf32>
    %c0_6 = arith.constant 0 : index
    %c0_7 = arith.constant 0 : index
    %31 = vector.load %arg5[%c0_6, %c0_7] : memref<4x8xf32, #tpu.memory_space<vmem>>, vector<4x8xf32>
    %32 = vector.extract_strided_slice %31 {offsets = [0, 0], sizes = [4, 1], strides = [1, 1]} : vector<4x8xf32> to vector<4x1xf32>
    %33 = vector.extract_strided_slice %30 {offsets = [0, 0], sizes = [1, 16], strides = [1, 1]} : vector<8x16xf32> to vector<1x16xf32>
    %34 = vector.broadcast %32 : vector<4x1xf32> to vector<4x16xf32>
    %35 = vector.broadcast %33 : vector<1x16xf32> to vector<4x16xf32>
    %36 = arith.mulf %34, %35 : vector<4x16xf32>
    %37 = vector.extract_strided_slice %31 {offsets = [0, 1], sizes = [4, 1], strides = [1, 1]} : vector<4x8xf32> to vector<4x1xf32>
    %38 = vector.extract_strided_slice %30 {offsets = [1, 0], sizes = [1, 16], strides = [1, 1]} : vector<8x16xf32> to vector<1x16xf32>
    %39 = vector.broadcast %37 : vector<4x1xf32> to vector<4x16xf32>
    %40 = vector.broadcast %38 : vector<1x16xf32> to vector<4x16xf32>
    %41 = arith.mulf %39, %40 : vector<4x16xf32>
    %42 = arith.addf %36, %41 : vector<4x16xf32>
    %43 = vector.extract_strided_slice %31 {offsets = [0, 2], sizes = [4, 1], strides = [1, 1]} : vector<4x8xf32> to vector<4x1xf32>
    %44 = vector.extract_strided_slice %30 {offsets = [2, 0], sizes = [1, 16], strides = [1, 1]} : vector<8x16xf32> to vector<1x16xf32>
    %45 = vector.broadcast %43 : vector<4x1xf32> to vector<4x16xf32>
    %46 = vector.broadcast %44 : vector<1x16xf32> to vector<4x16xf32>
    %47 = arith.mulf %45, %46 : vector<4x16xf32>
    %48 = arith.addf %42, %47 : vector<4x16xf32>
    %49 = vector.extract_strided_slice %31 {offsets = [0, 3], sizes = [4, 1], strides = [1, 1]} : vector<4x8xf32> to vector<4x1xf32>
    %50 = vector.extract_strided_slice %30 {offsets = [3, 0], sizes = [1, 16], strides = [1, 1]} : vector<8x16xf32> to vector<1x16xf32>
    %51 = vector.broadcast %49 : vector<4x1xf32> to vector<4x16xf32>
    %52 = vector.broadcast %50 : vector<1x16xf32> to vector<4x16xf32>
    %53 = arith.mulf %51, %52 : vector<4x16xf32>
    %54 = arith.addf %48, %53 : vector<4x16xf32>
    %55 = vector.extract_strided_slice %31 {offsets = [0, 4], sizes = [4, 1], strides = [1, 1]} : vector<4x8xf32> to vector<4x1xf32>
    %56 = vector.extract_strided_slice %30 {offsets = [4, 0], sizes = [1, 16], strides = [1, 1]} : vector<8x16xf32> to vector<1x16xf32>
    %57 = vector.broadcast %55 : vector<4x1xf32> to vector<4x16xf32>
    %58 = vector.broadcast %56 : vector<1x16xf32> to vector<4x16xf32>
    %59 = arith.mulf %57, %58 : vector<4x16xf32>
    %60 = arith.addf %54, %59 : vector<4x16xf32>
    %61 = vector.extract_strided_slice %31 {offsets = [0, 5], sizes = [4, 1], strides = [1, 1]} : vector<4x8xf32> to vector<4x1xf32>
    %62 = vector.extract_strided_slice %30 {offsets = [5, 0], sizes = [1, 16], strides = [1, 1]} : vector<8x16xf32> to vector<1x16xf32>
    %63 = vector.broadcast %61 : vector<4x1xf32> to vector<4x16xf32>
    %64 = vector.broadcast %62 : vector<1x16xf32> to vector<4x16xf32>
    %65 = arith.mulf %63, %64 : vector<4x16xf32>
    %66 = arith.addf %60, %65 : vector<4x16xf32>
    %67 = vector.extract_strided_slice %31 {offsets = [0, 6], sizes = [4, 1], strides = [1, 1]} : vector<4x8xf32> to vector<4x1xf32>
    %68 = vector.extract_strided_slice %30 {offsets = [6, 0], sizes = [1, 16], strides = [1, 1]} : vector<8x16xf32> to vector<1x16xf32>
    %69 = vector.broadcast %67 : vector<4x1xf32> to vector<4x16xf32>
    %70 = vector.broadcast %68 : vector<1x16xf32> to vector<4x16xf32>
    %71 = arith.mulf %69, %70 : vector<4x16xf32>
    %72 = arith.addf %66, %71 : vector<4x16xf32>
    %73 = vector.extract_strided_slice %31 {offsets = [0, 7], sizes = [4, 1], strides = [1, 1]} : vector<4x8xf32> to vector<4x1xf32>
    %74 = vector.extract_strided_slice %30 {offsets = [7, 0], sizes = [1, 16], strides = [1, 1]} : vector<8x16xf32> to vector<1x16xf32>
    %75 = vector.broadcast %73 : vector<4x1xf32> to vector<4x16xf32>
    %76 = vector.broadcast %74 : vector<1x16xf32> to vector<4x16xf32>
    %77 = arith.mulf %75, %76 : vector<4x16xf32>
    %78 = arith.addf %72, %77 : vector<4x16xf32>
    %c0_8 = arith.constant 0 : index
    %c0_9 = arith.constant 0 : index
    %79 = vector.load %arg6[%c0_8, %c0_9] : memref<4x1xf32, #tpu.memory_space<vmem>>, vector<4x1xf32>
    %80 = vector.broadcast %79 : vector<4x1xf32> to vector<4x16xf32>
    %81 = arith.addf %78, %80 : vector<4x16xf32>
    %c0_10 = arith.constant 0 : index
    %c0_11 = arith.constant 0 : index
    %c0_12 = arith.constant 0 : index
    %82 = vector.load %arg7[%c0_10, %c0_11, %c0_12] : memref<1x4x16xf32, #tpu.memory_space<vmem>>, vector<1x4x16xf32>
    %83 = vector.shape_cast %82 : vector<1x4x16xf32> to vector<4x16xf32>
    %84 = vector.shape_cast %81 : vector<4x16xf32> to vector<1x4x16xf32>
    tpu.vector_store %arg7[%c0_10, %c0_11, %c0_12], %84 {strides = array<i32>} : memref<1x4x16xf32, #tpu.memory_space<vmem>>, vector<1x4x16xf32>,
    return
  }
  func.func @transform_0(%arg0: i32, %arg1: i32) -> (i32, i32, i32) {
    %c0_i32 = arith.constant 0 : i32
    %c0_i32_0 = arith.constant 0 : i32
    return %arg1, %c0_i32, %arg0 : i32, i32, i32
  }
  func.func @transform_1(%arg0: i32, %arg1: i32) -> (i32, i32) {
    %c0_i32 = arith.constant 0 : i32
    %c0_i32_0 = arith.constant 0 : i32
    %c0_i32_1 = arith.constant 0 : i32
    return %c0_i32, %c0_i32_0 : i32, i32
  }
  func.func @transform_2(%arg0: i32, %arg1: i32) -> (i32, i32) {
    %c0_i32 = arith.constant 0 : i32
    %c0_i32_0 = arith.constant 0 : i32
    %c0_i32_1 = arith.constant 0 : i32
    return %c0_i32, %c0_i32_0 : i32, i32
  }
  func.func @transform_3(%arg0: i32, %arg1: i32) -> (i32, i32) {
    %c0_i32 = arith.constant 0 : i32
    %c0_i32_0 = arith.constant 0 : i32
    %c0_i32_1 = arith.constant 0 : i32
    return %c0_i32, %c0_i32_0 : i32, i32
  }
  func.func @transform_4(%arg0: i32, %arg1: i32) -> (i32, i32) {
    %c0_i32 = arith.constant 0 : i32
    %c0_i32_0 = arith.constant 0 : i32
    %c0_i32_1 = arith.constant 0 : i32
    return %c0_i32, %c0_i32_0 : i32, i32
  }
  func.func @transform_5(%arg0: i32, %arg1: i32) -> (i32, i32, i32) {
    %c0_i32 = arith.constant 0 : i32
    %c0_i32_0 = arith.constant 0 : i32
    return %arg1, %c0_i32, %arg0 : i32, i32, i32
  }
}

module attributes {stable_mosaic.version = 11 : i64} {
  func.func @_tuner_block_kernel(%arg0: i32, %arg1: i32, %arg2: memref<1x4x16xf32, #tpu.memory_space<vmem>>, %arg3: memref<8x4xf32, #tpu.memory_space<vmem>>, %arg4: memref<8x1xf32, #tpu.memory_space<vmem>>, %arg5: memref<4x8xf32, #tpu.memory_space<vmem>>, %arg6: memref<4x1xf32, #tpu.memory_space<vmem>>, %arg7: memref<1x4x16xf32, #tpu.memory_space<vmem>>) attributes {dimension_semantics = [#tpu.dimension_semantics<parallel>, #tpu.dimension_semantics<parallel>], iteration_bounds = array<i64: 1, 2>, scalar_prefetch = 0 : i64, scratch_operands = 0 : i64, tpu.core_type = #tpu.core_type<tc>, window_params = [{transform_indices = @transform_0, window_bounds = array<i64: 1, 4, 16>}, {pipeline_mode = #tpu.pipeline_mode<synchronous>, transform_indices = @transform_1, window_bounds = array<i64: 8, 4>}, {pipeline_mode = #tpu.pipeline_mode<synchronous>, transform_indices = @transform_2, window_bounds = array<i64: 8, 1>}, {pipeline_mode = #tpu.pipeline_mode<synchronous>, transform_indices = @transform_3, window_bounds = array<i64: 4, 8>}, {pipeline_mode = #tpu.pipeline_mode<synchronous>, transform_indices = @transform_4, window_bounds = array<i64: 4, 1>}, {transform_indices = @transform_5, window_bounds = array<i64: 1, 4, 16>}]} {
    %c0 = arith.constant 0 : index
    %c0_0 = arith.constant 0 : index
    %0 = vector.load %arg3[%c0, %c0_0] : memref<8x4xf32, #tpu.memory_space<vmem>>, vector<8x4xf32>
    %c0_1 = arith.constant 0 : index
    %c0_2 = arith.constant 0 : index
    %c0_3 = arith.constant 0 : index
    %1 = vector.load %arg2[%c0_1, %c0_2, %c0_3] : memref<1x4x16xf32, #tpu.memory_space<vmem>>, vector<1x4x16xf32>
    %2 = vector.shape_cast %1 : vector<1x4x16xf32> to vector<4x16xf32>
    %3 = vector.extract_strided_slice %0 {offsets = [0, 0], sizes = [8, 1], strides = [1, 1]} : vector<8x4xf32> to vector<8x1xf32>
    %4 = vector.extract_strided_slice %2 {offsets = [0, 0], sizes = [1, 16], strides = [1, 1]} : vector<4x16xf32> to vector<1x16xf32>
    %5 = vector.broadcast %3 : vector<8x1xf32> to vector<8x16xf32>
    %6 = vector.broadcast %4 : vector<1x16xf32> to vector<8x16xf32>
    %7 = arith.mulf %5, %6 : vector<8x16xf32>
    %8 = vector.extract_strided_slice %0 {offsets = [0, 1], sizes = [8, 1], strides = [1, 1]} : vector<8x4xf32> to vector<8x1xf32>
    %9 = vector.extract_strided_slice %2 {offsets = [1, 0], sizes = [1, 16], strides = [1, 1]} : vector<4x16xf32> to vector<1x16xf32>
    %10 = vector.broadcast %8 : vector<8x1xf32> to vector<8x16xf32>
    %11 = vector.broadcast %9 : vector<1x16xf32> to vector<8x16xf32>
    %12 = arith.mulf %10, %11 : vector<8x16xf32>
    %13 = arith.addf %7, %12 : vector<8x16xf32>
    %14 = vector.extract_strided_slice %0 {offsets = [0, 2], sizes = [8, 1], strides = [1, 1]} : vector<8x4xf32> to vector<8x1xf32>
    %15 = vector.extract_strided_slice %2 {offsets = [2, 0], sizes = [1, 16], strides = [1, 1]} : vector<4x16xf32> to vector<1x16xf32>
    %16 = vector.broadcast %14 : vector<8x1xf32> to vector<8x16xf32>
    %17 = vector.broadcast %15 : vector<1x16xf32> to vector<8x16xf32>
    %18 = arith.mulf %16, %17 : vector<8x16xf32>
    %19 = arith.addf %13, %18 : vector<8x16xf32>
    %20 = vector.extract_strided_slice %0 {offsets = [0, 3], sizes = [8, 1], strides = [1, 1]} : vector<8x4xf32> to vector<8x1xf32>
    %21 = vector.extract_strided_slice %2 {offsets = [3, 0], sizes = [1, 16], strides = [1, 1]} : vector<4x16xf32> to vector<1x16xf32>
    %22 = vector.broadcast %20 : vector<8x1xf32> to vector<8x16xf32>
    %23 = vector.broadcast %21 : vector<1x16xf32> to vector<8x16xf32>
    %24 = arith.mulf %22, %23 : vector<8x16xf32>
    %25 = arith.addf %19, %24 : vector<8x16xf32>
    %c0_4 = arith.constant 0 : index
    %c0_5 = arith.constant 0 : index
    %26 = vector.load %arg4[%c0_4, %c0_5] : memref<8x1xf32, #tpu.memory_space<vmem>>, vector<8x1xf32>
    %27 = vector.broadcast %26 : vector<8x1xf32> to vector<8x16xf32>
    %28 = arith.addf %25, %27 : vector<8x16xf32>
    %cst = arith.constant 0.000000e+00 : f32
    %29 = vector.broadcast %cst : f32 to vector<8x16xf32>
    %30 = arith.maximumf %28, %29 : vector<8x16xf32>
    %c0_6 = arith.constant 0 : index
    %c0_7 = arith.constant 0 : index
    %31 = vector.load %arg5[%c0_6, %c0_7] : memref<4x8xf32, #tpu.memory_space<vmem>>, vector<4x8xf32>
    %32 = vector.extract_strided_slice %31 {offsets = [0, 0], sizes = [4, 1], strides = [1, 1]} : vector<4x8xf32> to vector<4x1xf32>
    %33 = vector.extract_strided_slice %30 {offsets = [0, 0], sizes = [1, 16], strides = [1, 1]} : vector<8x16xf32> to vector<1x16xf32>
    %34 = vector.broadcast %32 : vector<4x1xf32> to vector<4x16xf32>
    %35 = vector.broadcast %33 : vector<1x16xf32> to vector<4x16xf32>
    %36 = arith.mulf %34, %35 : vector<4x16xf32>
    %37 = vector.extract_strided_slice %31 {offsets = [0, 1], sizes = [4, 1], strides = [1, 1]} : vector<4x8xf32> to vector<4x1xf32>
    %38 = vector.extract_strided_slice %30 {offsets = [1, 0], sizes = [1, 16], strides = [1, 1]} : vector<8x16xf32> to vector<1x16xf32>
    %39 = vector.broadcast %37 : vector<4x1xf32> to vector<4x16xf32>
    %40 = vector.broadcast %38 : vector<1x16xf32> to vector<4x16xf32>
    %41 = arith.mulf %39, %40 : vector<4x16xf32>
    %42 = arith.addf %36, %41 : vector<4x16xf32>
    %43 = vector.extract_strided_slice %31 {offsets = [0, 2], sizes = [4, 1], strides = [1, 1]} : vector<4x8xf32> to vector<4x1xf32>
    %44 = vector.extract_strided_slice %30 {offsets = [2, 0], sizes = [1, 16], strides = [1, 1]} : vector<8x16xf32> to vector<1x16xf32>
    %45 = vector.broadcast %43 : vector<4x1xf32> to vector<4x16xf32>
    %46 = vector.broadcast %44 : vector<1x16xf32> to vector<4x16xf32>
    %47 = arith.mulf %45, %46 : vector<4x16xf32>
    %48 = arith.addf %42, %47 : vector<4x16xf32>
    %49 = vector.extract_strided_slice %31 {offsets = [0, 3], sizes = [4, 1], strides = [1, 1]} : vector<4x8xf32> to vector<4x1xf32>
    %50 = vector.extract_strided_slice %30 {offsets = [3, 0], sizes = [1, 16], strides = [1, 1]} : vector<8x16xf32> to vector<1x16xf32>
    %51 = vector.broadcast %49 : vector<4x1xf32> to vector<4x16xf32>
    %52 = vector.broadcast %50 : vector<1x16xf32> to vector<4x16xf32>
    %53 = arith.mulf %51, %52 : vector<4x16xf32>
    %54 = arith.addf %48, %53 : vector<4x16xf32>
    %55 = vector.extract_strided_slice %31 {offsets = [0, 4], sizes = [4, 1], strides = [1, 1]} : vector<4x8xf32> to vector<4x1xf32>
    %56 = vector.extract_strided_slice %30 {offsets = [4, 0], sizes = [1, 16], strides = [1, 1]} : vector<8x16xf32> to vector<1x16xf32>
    %57 = vector.broadcast %55 : vector<4x1xf32> to vector<4x16xf32>
    %58 = vector.broadcast %56 : vector<1x16xf32> to vector<4x16xf32>
    %59 = arith.mulf %57, %58 : vector<4x16xf32>
    %60 = arith.addf %54, %59 : vector<4x16xf32>
    %61 = vector.extract_strided_slice %31 {offsets = [0, 5], sizes = [4, 1], strides = [1, 1]} : vector<4x8xf32> to vector<4x1xf32>
    %62 = vector.extract_strided_slice %30 {offsets = [5, 0], sizes = [1, 16], strides = [1, 1]} : vector<8x16xf32> to vector<1x16xf32>
    %63 = vector.broadcast %61 : vector<4x1xf32> to vector<4x16xf32>
    %64 = vector.broadcast %62 : vector<1x16xf32> to vector<4x16xf32>
    %65 = arith.mulf %63, %64 : vector<4x16xf32>
    %66 = arith.addf %60, %65 : vector<4x16xf32>
    %67 = vector.extract_strided_slice %31 {offsets = [0, 6], sizes = [4, 1], strides = [1, 1]} : vector<4x8xf32> to vector<4x1xf32>
    %68 = vector.extract_strided_slice %30 {offsets = [6, 0], sizes = [1, 16], strides = [1, 1]} : vector<8x16xf32> to vector<1x16xf32>
    %69 = vector.broadcast %67 : vector<4x1xf32> to vector<4x16xf32>
    %70 = vector.broadcast %68 : vector<1x16xf32> to vector<4x16xf32>
    %71 = arith.mulf %69, %70 : vector<4x16xf32>
    %72 = arith.addf %66, %71 : vector<4x16xf32>
    %73 = vector.extract_strided_slice %31 {offsets = [0, 7], sizes = [4, 1], strides = [1, 1]} : vector<4x8xf32> to vector<4x1xf32>
    %74 = vector.extract_strided_slice %30 {offsets = [7, 0], sizes = [1, 16], strides = [1, 1]} : vector<8x16xf32> to vector<1x16xf32>
    %75 = vector.broadcast %73 : vector<4x1xf32> to vector<4x16xf32>
    %76 = vector.broadcast %74 : vector<1x16xf32> to vector<4x16xf32>
    %77 = arith.mulf %75, %76 : vector<4x16xf32>
    %78 = arith.addf %72, %77 : vector<4x16xf32>
    %c0_8 = arith.constant 0 : index
    %c0_9 = arith.constant 0 : index
    %79 = vector.load %arg6[%c0_8, %c0_9] : memref<4x1xf32, #tpu.memory_space<vmem>>, vector<4x1xf32>
    %80 = vector.broadcast %79 : vector<4x1xf32> to vector<4x16xf32>
    %81 = arith.addf %78, %80 : vector<4x16xf32>
    %c0_10 = arith.constant 0 : index
    %c0_11 = arith.constant 0 : index
    %c0_12 = arith.constant 0 : index
    %82 = vector.load %arg7[%c0_10, %c0_11, %c0_12] : memref<1x4x16xf32, #tpu.memory_space<vmem>>, vector<1x4x16xf32>
    %83 = vector.shape_cast %82 : vector<1x4x16xf32> to vector<4x16xf32>
    %84 = vector.shape_cast %81 : vector<4x16xf32> to vector<1x4x16xf32>
    tpu.vector_store %arg7[%c0_10, %c0_11, %c0_12], %84 {strides = array<i32>} : memref<1x4x16xf32, #tpu.memory_space<vmem>>, vector<1x4x16xf32>,
    return
  }
  func.func @transform_0(%arg0: i32, %arg1: i32) -> (i32, i32, i32) {
    %c0_i32 = arith.constant 0 : i32
    %c0_i32_0 = arith.constant 0 : i32
    return %arg1, %c0_i32, %arg0 : i32, i32, i32
  }
  func.func @transform_1(%arg0: i32, %arg1: i32) -> (i32, i32) {
    %c0_i32 = arith.constant 0 : i32
    %c0_i32_0 = arith.constant 0 : i32
    %c0_i32_1 = arith.constant 0 : i32
    return %c0_i32, %c0_i32_0 : i32, i32
  }
  func.func @transform_2(%arg0: i32, %arg1: i32) -> (i32, i32) {
    %c0_i32 = arith.constant 0 : i32
    %c0_i32_0 = arith.constant 0 : i32
    %c0_i32_1 = arith.constant 0 : i32
    return %c0_i32, %c0_i32_0 : i32, i32
  }
  func.func @transform_3(%arg0: i32, %arg1: i32) -> (i32, i32) {
    %c0_i32 = arith.constant 0 : i32
    %c0_i32_0 = arith.constant 0 : i32
    %c0_i32_1 = arith.constant 0 : i32
    return %c0_i32, %c0_i32_0 : i32, i32
  }
  func.func @transform_4(%arg0: i32, %arg1: i32) -> (i32, i32) {
    %c0_i32 = arith.constant 0 : i32
    %c0_i32_0 = arith.constant 0 : i32
    %c0_i32_1 = arith.constant 0 : i32
    return %c0_i32, %c0_i32_0 : i32, i32
  }
  func.func @transform_5(%arg0: i32, %arg1: i32) -> (i32, i32, i32) {
    %c0_i32 = arith.constant 0 : i32
    %c0_i32_0 = arith.constant 0 : i32
    return %arg1, %c0_i32, %arg0 : i32, i32, i32
  }
}

</mosaic_0001>

<llo_original>
// kernel: tpu_custom_call.1
$region0: #{tpu_custom_call.1}
  #allocation0 [shape = 'u32[]', space=smem, size = 0x4, offset = 0x4, fixed_abs, tag = 'smem constant byte address 0x4 - core index']
  #allocation1 [shape = 'u32[144,128]{1,0:T(1,128)}', space=vmem, size = 0x12000, scoped, tag = 'internal scratch']
  %s0 = inlined_call_operand.vmem [shape: f32[2,4,16], index: 0, kind: input, shape index: {}]
  %s1 = inlined_call_operand.vmem [shape: f32[8,4], index: 1, kind: input, shape index: {}]
  %s2 = inlined_call_operand.vmem [shape: f32[8,1], index: 2, kind: input, shape index: {}]
  %s3 = inlined_call_operand.vmem [shape: f32[4,8], index: 3, kind: input, shape index: {}]
  %s4 = inlined_call_operand.vmem [shape: f32[4,1], index: 4, kind: input, shape index: {}]
  %s5 = inlined_call_operand.hbm [shape: f32[2,4,16], index: 5, kind: output, shape index: {}]
  %s6 = sld [smem:[#allocation0]]
  $region53: #{tpu_custom_call.1} parent=0
    _
  %s8 = ssub.s32 1, %s6
  %s9 = scalar_select 0, %s8, %s6
  $region1: #{tpu_custom_call.1} parent=0
    #allocation2 [shape = 'u8[4096]{0}', space=vmem, size = 0x1000, scoped, tag = 'output window, operand 0']
    #allocation3 [shape = 's32[2]{0}', space=sflag, size = 0x8, scoped, tag = 'scoped memory for tpu_custom_call.1']
    %10 = vsyncpa [#allocation3], 0
    %s11 = scalar_lea.sflag [#allocation3], 1
    %12 = vsyncpa %s11, 0
    loop: start=0, step=1, limit=4
    $region2: #{tpu_custom_call.1} parent=1 // loop_pre_header
      _
    $region3: #{tpu_custom_call.1} parent=1 // loop_header
      %s14 = sphi 0, %s18
      %p15 = scmp.ge.s32.totalorder %s14, 4
      %s21 = sphi 0, %s33
      %s22 = sphi 0, %s29
      %s23 = sphi 0, %s21
      %s24 = sphi 0, %s22
      %s25 = sphi 0, %s23
      %s26 = sphi 0, %s24
      %s38 = sphi 0, %s40
      %s41 = sphi 0, %s38
      %s42 = sphi 0, %s41
      %s58 = sphi 0, %s42
      %s62 = sphi 0, %s62
      %s64 = sphi 0, %s62
      %s65 = sphi 0, %s64
      %s79 = sphi 0, %s65
      %s83 = sphi 0, %s83
      %s85 = sphi 0, %s83
      %s86 = sphi 0, %s85
      %s100 = sphi 0, %s86
      %s104 = sphi 0, %s104
      %s106 = sphi 0, %s104
      %s107 = sphi 0, %s106
      %s121 = sphi 0, %s107
      %s125 = sphi 0, %s125
      %s127 = sphi 0, %s125
      %s128 = sphi 0, %s127
      %s142 = sphi 0, %s128
      %s150 = sphi 0, %s152
      %s153 = sphi 0, %s150
      %s154 = sphi 0, %s153
      %s170 = sphi 0, %s154
    $region4: #{tpu_custom_call.1} parent=1 // loop_header_branch
      %17 = sbr.rel (%p15) target = $region8
    $region5: #{tpu_custom_call.1} parent=1 // loop_body
      %s19 = ssub.s32 %s14, 1
      %s20 = ssub.s32 %s14, 2
      %s27 = sadd.s32 1, %s22
      %p28 = scmp.ge.s32.totalorder %s27, 2
      %s29 = scalar_select %p28, 0, %s27
      %s30 = sadd.s32 1, %s21
      %s31 = scalar_select %p28, %s30, %s21
      %p32 = scmp.ge.s32.totalorder %s31, 1
      %s33 = scalar_select %p32, 0, %s31
      %s34 = ssub.s32 %s22, %s29
      %s35 = ssub.s32 %s21, %s33
      %s36 = sor.u32 %s34, %s35
      %p37 = scmp.eq.s32.totalorder %s36, 0
      %s39 = sadd.s32 %s38, 1
      %s40 = scalar_select %p37, %s38, %s39
      %p43 = pneg %p37
      %p44 = scmp.eq.s32.totalorder %s14, 1
      %p45 = por %p43, %p44
      %p46 = scmp.ne.s32.totalorder %s38, %s41
      %p47 = scmp.eq.s32.totalorder %s14, 0
      %p48 = por %p46, %p47
      %p49 = scmp.ne.s32.totalorder %s38, %s41
      %p50 = scmp.eq.s32.totalorder %s19, 1
      %p51 = por %p49, %p50
      %p52 = scmp.ne.s32.totalorder %s41, %s42
      %p53 = scmp.eq.s32.totalorder %s19, 0
      %p54 = por %p52, %p53
      %p55 = scmp.ne.s32.totalorder %s41, %s42
      %p56 = scmp.eq.s32.totalorder %s20, 1
      %p57 = por %p55, %p56
      %p59 = scmp.ne.s32.totalorder %s42, %s58
      %p60 = scmp.eq.s32.totalorder %s20, 0
      %p61 = por %p59, %p60
      %s63 = sadd.s32 %s62, 1
      %p66 = scmp.eq.s32.totalorder %s14, 1
      %p67 = scmp.ne.s32.totalorder %s62, %s64
      %p68 = scmp.eq.s32.totalorder %s14, 0
      %p69 = por %p67, %p68
      %p70 = scmp.ne.s32.totalorder %s62, %s64
      %p71 = scmp.eq.s32.totalorder %s19, 1
      %p72 = por %p70, %p71
      %p73 = scmp.ne.s32.totalorder %s64, %s65
      %p74 = scmp.eq.s32.totalorder %s19, 0
      %p75 = por %p73, %p74
      %p76 = scmp.ne.s32.totalorder %s64, %s65
      %p77 = scmp.eq.s32.totalorder %s20, 1
      %p78 = por %p76, %p77
      %p80 = scmp.ne.s32.totalorder %s65, %s79
      %p81 = scmp.eq.s32.totalorder %s20, 0
      %p82 = por %p80, %p81
      %s84 = sadd.s32 %s83, 1
      %p87 = scmp.eq.s32.totalorder %s14, 1
      %p88 = scmp.ne.s32.totalorder %s83, %s85
      %p89 = scmp.eq.s32.totalorder %s14, 0
      %p90 = por %p88, %p89
      %p91 = scmp.ne.s32.totalorder %s83, %s85
      %p92 = scmp.eq.s32.totalorder %s19, 1
      %p93 = por %p91, %p92
      %p94 = scmp.ne.s32.totalorder %s85, %s86
      %p95 = scmp.eq.s32.totalorder %s19, 0
      %p96 = por %p94, %p95
      %p97 = scmp.ne.s32.totalorder %s85, %s86
      %p98 = scmp.eq.s32.totalorder %s20, 1
      %p99 = por %p97, %p98
      %p101 = scmp.ne.s32.totalorder %s86, %s100
      %p102 = scmp.eq.s32.totalorder %s20, 0
      %p103 = por %p101, %p102
      %s105 = sadd.s32 %s104, 1
      %p108 = scmp.eq.s32.totalorder %s14, 1
      %p109 = scmp.ne.s32.totalorder %s104, %s106
      %p110 = scmp.eq.s32.totalorder %s14, 0
      %p111 = por %p109, %p110
      %p112 = scmp.ne.s32.totalorder %s104, %s106
      %p113 = scmp.eq.s32.totalorder %s19, 1
      %p114 = por %p112, %p113
      %p115 = scmp.ne.s32.totalorder %s106, %s107
      %p116 = scmp.eq.s32.totalorder %s19, 0
      %p117 = por %p115, %p116
      %p118 = scmp.ne.s32.totalorder %s106, %s107
      %p119 = scmp.eq.s32.totalorder %s20, 1
      %p120 = por %p118, %p119
      %p122 = scmp.ne.s32.totalorder %s107, %s121
      %p123 = scmp.eq.s32.totalorder %s20, 0
      %p124 = por %p122, %p123
      %s126 = sadd.s32 %s125, 1
      %p129 = scmp.eq.s32.totalorder %s14, 1
      %p130 = scmp.ne.s32.totalorder %s125, %s127
      %p131 = scmp.eq.s32.totalorder %s14, 0
      %p132 = por %p130, %p131
      %p133 = scmp.ne.s32.totalorder %s125, %s127
      %p134 = scmp.eq.s32.totalorder %s19, 1
      %p135 = por %p133, %p134
      %p136 = scmp.ne.s32.totalorder %s127, %s128
      %p137 = scmp.eq.s32.totalorder %s19, 0
      %p138 = por %p136, %p137
      %p139 = scmp.ne.s32.totalorder %s127, %s128
      %p140 = scmp.eq.s32.totalorder %s20, 1
      %p141 = por %p139, %p140
      %p143 = scmp.ne.s32.totalorder %s128, %s142
      %p144 = scmp.eq.s32.totalorder %s20, 0
      %p145 = por %p143, %p144
      %s146 = ssub.s32 %s22, %s29
      %s147 = ssub.s32 %s21, %s33
      %s148 = sor.u32 %s146, %s147
      %p149 = scmp.eq.s32.totalorder %s148, 0
      %s151 = sadd.s32 %s150, 1
      %s152 = scalar_select %p149, %s150, %s151
      %p155 = pneg %p149
      %p156 = scmp.eq.s32.totalorder %s14, 1
      %p157 = por %p155, %p156
      %p158 = scmp.ne.s32.totalorder %s150, %s153
      %p159 = scmp.eq.s32.totalorder %s14, 0
      %p160 = por %p158, %p159
      %p161 = scmp.ne.s32.totalorder %s150, %s153
      %p162 = scmp.eq.s32.totalorder %s19, 1
      %p163 = por %p161, %p162
      %p164 = scmp.ne.s32.totalorder %s153, %s154
      %p165 = scmp.eq.s32.totalorder %s19, 0
      %p166 = por %p164, %p165
      %p167 = scmp.ne.s32.totalorder %s153, %s154
      %p168 = scmp.eq.s32.totalorder %s20, 1
      %p169 = por %p167, %p168
      %p171 = scmp.ne.s32.totalorder %s154, %s170
      %p172 = scmp.eq.s32.totalorder %s20, 0
      %p173 = por %p171, %p172
      %p174 = scmp.le.s32.totalorder 1, %s14
      %p175 = scmp.lt.s32.totalorder %s14, 3
      %p176 = pnand %p174, %p175
      %p177 = pneg %p176
      // Predicated region
      $region9: #{tpu_custom_call.1} parent=5 // pred_check
        _
      $region10: #{tpu_custom_call.1} parent=5 // pred_check_branch
        %179 = sbr.rel (%p176) target = $region12
      $region11: #{tpu_custom_call.1} parent=5 // pred_region
        %s180 = ssub.s32 %s14, 1
        // Predicated region
        $region13: #{tpu_custom_call.1} parent=11 // pred_check
          %p181 = pneg %p75
        $region14: #{tpu_custom_call.1} parent=11 // pred_check_branch
          %183 = sbr.rel (%p181) target = $region16
        $region15: #{tpu_custom_call.1} parent=11 // pred_region
          _
        $region16: #{tpu_custom_call.1} parent=11 // pred_fallthru
          _
        // Predicated region
        $region17: #{tpu_custom_call.1} parent=11 // pred_check
          %p184 = pneg %p96
        $region18: #{tpu_custom_call.1} parent=11 // pred_check_branch
          %186 = sbr.rel (%p184) target = $region20
        $region19: #{tpu_custom_call.1} parent=11 // pred_region
          _
        $region20: #{tpu_custom_call.1} parent=11 // pred_fallthru
          _
        // Predicated region
        $region21: #{tpu_custom_call.1} parent=11 // pred_check
          %p187 = pneg %p117
        $region22: #{tpu_custom_call.1} parent=11 // pred_check_branch
          %189 = sbr.rel (%p187) target = $region24
        $region23: #{tpu_custom_call.1} parent=11 // pred_region
          _
        $region24: #{tpu_custom_call.1} parent=11 // pred_fallthru
          _
        // Predicated region
        $region25: #{tpu_custom_call.1} parent=11 // pred_check
          %p190 = pneg %p138
        $region26: #{tpu_custom_call.1} parent=11 // pred_check_branch
          %192 = sbr.rel (%p190) target = $region28
        $region27: #{tpu_custom_call.1} parent=11 // pred_region
          _
        $region28: #{tpu_custom_call.1} parent=11 // pred_fallthru
          _
      $region12: #{tpu_custom_call.1} parent=5 // pred_fallthru
        _
      %p193 = scmp.lt.s32.totalorder %s14, 2
      // Predicated region
      $region29: #{tpu_custom_call.1} parent=5 // pred_check
        %p194 = pneg %p193
      $region30: #{tpu_custom_call.1} parent=5 // pred_check_branch
        %196 = sbr.rel (%p194) target = $region32
      $region31: #{tpu_custom_call.1} parent=5 // pred_region
        // Predicated region
        $region33: #{tpu_custom_call.1} parent=31 // pred_check
          %p197 = pneg %p48
        $region34: #{tpu_custom_call.1} parent=31 // pred_check_branch
          %199 = sbr.rel (%p197) target = $region36
        $region35: #{tpu_custom_call.1} parent=31 // pred_region
          %p200 = scmp.lt.s32.totalorder %s22, 1
          %s201 = scalar_select %p200, %s22, 1
          %p202 = scmp.lt.s32.totalorder %s21, 0
          %s203 = scalar_select %p202, %s21, 0
          %s204 = sadd.s32 %s203, %s201
          %s205 = smul.addr %s204, 4
          %s206 = scalar_lea.vmem %s0, %s205
        $region36: #{tpu_custom_call.1} parent=31 // pred_fallthru
          _
      $region32: #{tpu_custom_call.1} parent=5 // pred_fallthru
        _
      %p207 = scmp.le.s32.totalorder 1, %s14
      %p208 = scmp.lt.s32.totalorder %s14, 3
      %p209 = pnand %p207, %p208
      %p210 = pneg %p209
      // Predicated region
      $region37: #{tpu_custom_call.1} parent=5 // pred_check
        _
      $region38: #{tpu_custom_call.1} parent=5 // pred_check_branch
        %212 = sbr.rel (%p209) target = $region40
      $region39: #{tpu_custom_call.1} parent=5 // pred_region
        %s213 = ssub.s32 %s14, 1
        %p214 = scmp.lt.s32.totalorder %s24, 1
        %s215 = scalar_select %p214, %s24, 1
        %p216 = scmp.lt.s32.totalorder %s23, 0
        %s217 = scalar_select %p216, %s23, 0
        %s218 = sadd.s32 %s217, %s215
        %s219 = smul.addr %s218, 4
        %s220 = scalar_lea.vmem %s0, %s219
        %p221 = pneg %p54
        %p222 = pneg %p51
        %p223 = pneg %p75
        %p224 = pneg %p72
        %p225 = pneg %p96
        %p226 = pneg %p93
        %p227 = pneg %p117
        %p228 = pneg %p114
        %p229 = pneg %p138
        %p230 = pneg %p135
        %p231 = pneg %p166
        %p232 = pneg %p163
        %s233 = sand.u32 %s153, 1
        %s234 = scalar_lea.sflag [#allocation3], %s233
        %s235 = sand.u32 %s153, 1
        %s236 = smul.addr %s235, 4
        %s237 = scalar_lea.vmem [#allocation2], %s236
        %p238 = scmp.lt.s32.totalorder %s24, 1
        %s239 = scalar_select %p238, %s24, 1
        %p240 = scmp.lt.s32.totalorder %s23, 0
        %s241 = scalar_select %p240, %s23, 0
        %s242 = sadd.s32 %s241, %s239
        %s243 = smul.addr %s242, 4
        %s244 = scalar_lea.vmem %s0, %s243
        %v245 = vld [vmem:[%s1] sm:$0xff]
        %v246 = vld [vmem:[%s244] sm:$0xf]
        %248 = vset.pattern.permute.xlu0 0
        %249 = vperm.xlu0 %248, %v245
        %v250 = vpop.permute.xlu0 %249
        %v252 = vlaneseq
        %v253 = vshrl.u32 %v252, 7
        %v254 = vsub.s32 0, %v253
        %v255 = vrot.slane %v246, %v254
        %v256 = vmul.f32 %v250, %v255
        %257 = vset.pattern.permute.xlu0 1
        %258 = vperm.xlu0 %257, %v245
        %v259 = vpop.permute.xlu0 %258
        %v261 = vlaneseq
        %v262 = vshrl.u32 %v261, 7
        %v263 = vsub.s32 1, %v262
        %v264 = vrot.slane %v246, %v263
        %v265 = vmul.f32 %v259, %v264
        %v266 = vadd.f32 %v256, %v265
        %267 = vset.pattern.permute.xlu0 2
        %268 = vperm.xlu0 %267, %v245
        %v269 = vpop.permute.xlu0 %268
        %v271 = vlaneseq
        %v272 = vshrl.u32 %v271, 7
        %v273 = vsub.s32 2, %v272
        %v274 = vrot.slane %v246, %v273
        %v275 = vmul.f32 %v269, %v274
        %v276 = vadd.f32 %v266, %v275
        %277 = vset.pattern.permute.xlu0 3
        %278 = vperm.xlu0 %277, %v245
        %v279 = vpop.permute.xlu0 %278
        %v281 = vlaneseq
        %v282 = vshrl.u32 %v281, 7
        %v283 = vsub.s32 3, %v282
        %v284 = vrot.slane %v246, %v283
        %v285 = vmul.f32 %v279, %v284
        %v286 = vadd.f32 %v276, %v285
        %v287 = vld [vmem:[%s2] sm:$0xff]
        %289 = vset.pattern.permute.xlu0 0
        %290 = vperm.xlu0 %289, %v287
        %v291 = vpop.permute.xlu0 %290
        %v293 = vadd.f32 %v286, %v291
        %v294 = vmax.f32 %v293, 0.0
        %v295 = vld [vmem:[%s3] sm:$0xf]
        %297 = vset.pattern.permute.xlu0 0
        %298 = vperm.xlu0 %297, %v295
        %v299 = vpop.permute.xlu0 %298
        %v301 = vlaneseq
        %v302 = vshrl.u32 %v301, 7
        %v303 = vsub.s32 0, %v302
        %v304 = vrot.slane %v294, %v303
        %v305 = vmul.f32 %v299, %v304
        %306 = vset.pattern.permute.xlu0 1
        %307 = vperm.xlu0 %306, %v295
        %v308 = vpop.permute.xlu0 %307
        %v310 = vlaneseq
        %v311 = vshrl.u32 %v310, 7
        %v312 = vsub.s32 1, %v311
        %v313 = vrot.slane %v294, %v312
        %v314 = vmul.f32 %v308, %v313
        %v315 = vadd.f32 %v305, %v314
        %316 = vset.pattern.permute.xlu0 2
        %317 = vperm.xlu0 %316, %v295
        %v318 = vpop.permute.xlu0 %317
        %v320 = vlaneseq
        %v321 = vshrl.u32 %v320, 7
        %v322 = vsub.s32 2, %v321
        %v323 = vrot.slane %v294, %v322
        %v324 = vmul.f32 %v318, %v323
        %v325 = vadd.f32 %v315, %v324
        %326 = vset.pattern.permute.xlu0 3
        %327 = vperm.xlu0 %326, %v295
        %v328 = vpop.permute.xlu0 %327
        %v330 = vlaneseq
        %v331 = vshrl.u32 %v330, 7
        %v332 = vsub.s32 3, %v331
        %v333 = vrot.slane %v294, %v332
        %v334 = vmul.f32 %v328, %v333
        %v335 = vadd.f32 %v325, %v334
        %336 = vset.pattern.permute.xlu0 4
        %337 = vperm.xlu0 %336, %v295
        %v338 = vpop.permute.xlu0 %337
        %v340 = vlaneseq
        %v341 = vshrl.u32 %v340, 7
        %v342 = vsub.s32 4, %v341
        %v343 = vrot.slane %v294, %v342
        %v344 = vmul.f32 %v338, %v343
        %v345 = vadd.f32 %v335, %v344
        %346 = vset.pattern.permute.xlu0 5
        %347 = vperm.xlu0 %346, %v295
        %v348 = vpop.permute.xlu0 %347
        %v350 = vlaneseq
        %v351 = vshrl.u32 %v350, 7
        %v352 = vsub.s32 5, %v351
        %v353 = vrot.slane %v294, %v352
        %v354 = vmul.f32 %v348, %v353
        %v355 = vadd.f32 %v345, %v354
        %356 = vset.pattern.permute.xlu0 6
        %357 = vperm.xlu0 %356, %v295
        %v358 = vpop.permute.xlu0 %357
        %v360 = vlaneseq
        %v361 = vshrl.u32 %v360, 7
        %v362 = vsub.s32 6, %v361
        %v363 = vrot.slane %v294, %v362
        %v364 = vmul.f32 %v358, %v363
        %v365 = vadd.f32 %v355, %v364
        %366 = vset.pattern.permute.xlu0 7
        %367 = vperm.xlu0 %366, %v295
        %v368 = vpop.permute.xlu0 %367
        %v370 = vlaneseq
        %v371 = vshrl.u32 %v370, 7
        %v372 = vsub.s32 7, %v371
        %v373 = vrot.slane %v294, %v372
        %v374 = vmul.f32 %v368, %v373
        %v375 = vadd.f32 %v365, %v374
        %v376 = vld [vmem:[%s4] sm:$0xf]
        %378 = vset.pattern.permute.xlu0 0
        %379 = vperm.xlu0 %378, %v376
        %v380 = vpop.permute.xlu0 %379
        %v382 = vadd.f32 %v375, %v380
        %vm383 = vcmask 125952
        %384 = vst.msk [vmem:[%s237] sm:$0xf] %vm383, %v382
        %s385 = sand.u32 %s153, 1
        %s386 = scalar_lea.sflag [#allocation3], %s385
        %s387 = sand.u32 %s153, 1
        %s388 = smul.addr %s387, 4
        %s389 = scalar_lea.vmem [#allocation2], %s388
        // Predicated region
        $region41: #{tpu_custom_call.1} parent=39 // pred_check
          %p390 = pneg %p163
        $region42: #{tpu_custom_call.1} parent=39 // pred_check_branch
          %392 = sbr.rel (%p390) target = $region44
        $region43: #{tpu_custom_call.1} parent=39 // pred_region
          %s394 = ssub.s32 64, 64
          %395 = vsyncadd %s386, %s394
          %s396 = sadd.s32 %s23, %s24
          %s397 = smul.addr %s396, 64
          %s398 = scalar_lea.hbm %s5, %s397
          %s400 = sshll.u32 %s389, 4
          %s401 = int_to_ptr.vmem [resolvable:$true] %s400
          %403 = dma.vmem_to_hbm [thread:$0]  %s401, 64, %s398, %s386
        $region44: #{tpu_custom_call.1} parent=39 // pred_fallthru
          _
      $region40: #{tpu_custom_call.1} parent=5 // pred_fallthru
        _
      %p404 = scmp.le.s32.totalorder 2, %s14
      // Predicated region
      $region45: #{tpu_custom_call.1} parent=5 // pred_check
        %p405 = pneg %p404
      $region46: #{tpu_custom_call.1} parent=5 // pred_check_branch
        %407 = sbr.rel (%p405) target = $region48
      $region47: #{tpu_custom_call.1} parent=5 // pred_region
        %s408 = ssub.s32 %s14, 2
        // Predicated region
        $region49: #{tpu_custom_call.1} parent=47 // pred_check
          %p409 = pneg %p169
        $region50: #{tpu_custom_call.1} parent=47 // pred_check_branch
          %411 = sbr.rel (%p409) target = $region52
        $region51: #{tpu_custom_call.1} parent=47 // pred_region
          %s412 = sand.u32 %s154, 1
          %s413 = scalar_lea.sflag [#allocation3], %s412
          %s414 = sand.u32 %s154, 1
          %s415 = smul.addr %s414, 4
          %s416 = scalar_lea.vmem [#allocation2], %s415
          %417 = dma.done %s413, 64
        $region52: #{tpu_custom_call.1} parent=47 // pred_fallthru
          _
      $region48: #{tpu_custom_call.1} parent=5 // pred_fallthru
        _
    $region6: #{tpu_custom_call.1} parent=1 // loop_footer
      %s18 = sadd.s32 1, %s14
    $region7: #{tpu_custom_call.1} parent=1 // loop_footer_branch
      %13 = sbr.rel target = $region3
    $region8: #{tpu_custom_call.1} parent=1 // loop_exit
      _
    %418 = vsyncpa [#allocation3], 1
    %s419 = scalar_lea.sflag [#allocation3], 1
    %420 = vsyncpa %s419, 1

// kernel: tpu_custom_call.1
$region0: #{tpu_custom_call.1}
  #allocation0 [shape = 'u32[]', space=smem, size = 0x4, offset = 0x4, fixed_abs, tag = 'smem constant byte address 0x4 - core index']
  #allocation1 [shape = 'u32[144,128]{1,0:T(1,128)}', space=vmem, size = 0x12000, scoped, tag = 'internal scratch']
  %s0 = inlined_call_operand.vmem [shape: f32[2,4,16], index: 0, kind: input, shape index: {}]
  %s1 = inlined_call_operand.vmem [shape: f32[8,4], index: 1, kind: input, shape index: {}]
  %s2 = inlined_call_operand.vmem [shape: f32[8,1], index: 2, kind: input, shape index: {}]
  %s3 = inlined_call_operand.vmem [shape: f32[4,8], index: 3, kind: input, shape index: {}]
  %s4 = inlined_call_operand.vmem [shape: f32[4,1], index: 4, kind: input, shape index: {}]
  %s5 = inlined_call_operand.hbm [shape: f32[2,4,16], index: 5, kind: output, shape index: {}]
  %s6 = sld [smem:[#allocation0]]
  $region53: #{tpu_custom_call.1} parent=0
    _
  %s8 = ssub.s32 1, %s6
  %s9 = scalar_select 0, %s8, %s6
  $region1: #{tpu_custom_call.1} parent=0
    #allocation2 [shape = 'u8[4096]{0}', space=vmem, size = 0x1000, scoped, tag = 'output window, operand 0']
    #allocation3 [shape = 's32[2]{0}', space=sflag, size = 0x8, scoped, tag = 'scoped memory for tpu_custom_call.1']
    %10 = vsyncpa [#allocation3], 0
    %s11 = scalar_lea.sflag [#allocation3], 1
    %12 = vsyncpa %s11, 0
    loop: start=0, step=1, limit=4
    $region2: #{tpu_custom_call.1} parent=1 // loop_pre_header
      _
    $region3: #{tpu_custom_call.1} parent=1 // loop_header
      %s14 = sphi 0, %s18
      %p15 = scmp.ge.s32.totalorder %s14, 4
      %s21 = sphi 0, %s33
      %s22 = sphi 0, %s29
      %s23 = sphi 0, %s21
      %s24 = sphi 0, %s22
      %s25 = sphi 0, %s23
      %s26 = sphi 0, %s24
      %s38 = sphi 0, %s40
      %s41 = sphi 0, %s38
      %s42 = sphi 0, %s41
      %s58 = sphi 0, %s42
      %s62 = sphi 0, %s62
      %s64 = sphi 0, %s62
      %s65 = sphi 0, %s64
      %s79 = sphi 0, %s65
      %s83 = sphi 0, %s83
      %s85 = sphi 0, %s83
      %s86 = sphi 0, %s85
      %s100 = sphi 0, %s86
      %s104 = sphi 0, %s104
      %s106 = sphi 0, %s104
      %s107 = sphi 0, %s106
      %s121 = sphi 0, %s107
      %s125 = sphi 0, %s125
      %s127 = sphi 0, %s125
      %s128 = sphi 0, %s127
      %s142 = sphi 0, %s128
      %s150 = sphi 0, %s152
      %s153 = sphi 0, %s150
      %s154 = sphi 0, %s153
      %s170 = sphi 0, %s154
    $region4: #{tpu_custom_call.1} parent=1 // loop_header_branch
      %17 = sbr.rel (%p15) target = $region8
    $region5: #{tpu_custom_call.1} parent=1 // loop_body
      %s19 = ssub.s32 %s14, 1
      %s20 = ssub.s32 %s14, 2
      %s27 = sadd.s32 1, %s22
      %p28 = scmp.ge.s32.totalorder %s27, 2
      %s29 = scalar_select %p28, 0, %s27
      %s30 = sadd.s32 1, %s21
      %s31 = scalar_select %p28, %s30, %s21
      %p32 = scmp.ge.s32.totalorder %s31, 1
      %s33 = scalar_select %p32, 0, %s31
      %s34 = ssub.s32 %s22, %s29
      %s35 = ssub.s32 %s21, %s33
      %s36 = sor.u32 %s34, %s35
      %p37 = scmp.eq.s32.totalorder %s36, 0
      %s39 = sadd.s32 %s38, 1
      %s40 = scalar_select %p37, %s38, %s39
      %p43 = pneg %p37
      %p44 = scmp.eq.s32.totalorder %s14, 1
      %p45 = por %p43, %p44
      %p46 = scmp.ne.s32.totalorder %s38, %s41
      %p47 = scmp.eq.s32.totalorder %s14, 0
      %p48 = por %p46, %p47
      %p49 = scmp.ne.s32.totalorder %s38, %s41
      %p50 = scmp.eq.s32.totalorder %s19, 1
      %p51 = por %p49, %p50
      %p52 = scmp.ne.s32.totalorder %s41, %s42
      %p53 = scmp.eq.s32.totalorder %s19, 0
      %p54 = por %p52, %p53
      %p55 = scmp.ne.s32.totalorder %s41, %s42
      %p56 = scmp.eq.s32.totalorder %s20, 1
      %p57 = por %p55, %p56
      %p59 = scmp.ne.s32.totalorder %s42, %s58
      %p60 = scmp.eq.s32.totalorder %s20, 0
      %p61 = por %p59, %p60
      %s63 = sadd.s32 %s62, 1
      %p66 = scmp.eq.s32.totalorder %s14, 1
      %p67 = scmp.ne.s32.totalorder %s62, %s64
      %p68 = scmp.eq.s32.totalorder %s14, 0
      %p69 = por %p67, %p68
      %p70 = scmp.ne.s32.totalorder %s62, %s64
      %p71 = scmp.eq.s32.totalorder %s19, 1
      %p72 = por %p70, %p71
      %p73 = scmp.ne.s32.totalorder %s64, %s65
      %p74 = scmp.eq.s32.totalorder %s19, 0
      %p75 = por %p73, %p74
      %p76 = scmp.ne.s32.totalorder %s64, %s65
      %p77 = scmp.eq.s32.totalorder %s20, 1
      %p78 = por %p76, %p77
      %p80 = scmp.ne.s32.totalorder %s65, %s79
      %p81 = scmp.eq.s32.totalorder %s20, 0
      %p82 = por %p80, %p81
      %s84 = sadd.s32 %s83, 1
      %p87 = scmp.eq.s32.totalorder %s14, 1
      %p88 = scmp.ne.s32.totalorder %s83, %s85
      %p89 = scmp.eq.s32.totalorder %s14, 0
      %p90 = por %p88, %p89
      %p91 = scmp.ne.s32.totalorder %s83, %s85
      %p92 = scmp.eq.s32.totalorder %s19, 1
      %p93 = por %p91, %p92
      %p94 = scmp.ne.s32.totalorder %s85, %s86
      %p95 = scmp.eq.s32.totalorder %s19, 0
      %p96 = por %p94, %p95
      %p97 = scmp.ne.s32.totalorder %s85, %s86
      %p98 = scmp.eq.s32.totalorder %s20, 1
      %p99 = por %p97, %p98
      %p101 = scmp.ne.s32.totalorder %s86, %s100
      %p102 = scmp.eq.s32.totalorder %s20, 0
      %p103 = por %p101, %p102
      %s105 = sadd.s32 %s104, 1
      %p108 = scmp.eq.s32.totalorder %s14, 1
      %p109 = scmp.ne.s32.totalorder %s104, %s106
      %p110 = scmp.eq.s32.totalorder %s14, 0
      %p111 = por %p109, %p110
      %p112 = scmp.ne.s32.totalorder %s104, %s106
      %p113 = scmp.eq.s32.totalorder %s19, 1
      %p114 = por %p112, %p113
      %p115 = scmp.ne.s32.totalorder %s106, %s107
      %p116 = scmp.eq.s32.totalorder %s19, 0
      %p117 = por %p115, %p116
      %p118 = scmp.ne.s32.totalorder %s106, %s107
      %p119 = scmp.eq.s32.totalorder %s20, 1
      %p120 = por %p118, %p119
      %p122 = scmp.ne.s32.totalorder %s107, %s121
      %p123 = scmp.eq.s32.totalorder %s20, 0
      %p124 = por %p122, %p123
      %s126 = sadd.s32 %s125, 1
      %p129 = scmp.eq.s32.totalorder %s14, 1
      %p130 = scmp.ne.s32.totalorder %s125, %s127
      %p131 = scmp.eq.s32.totalorder %s14, 0
      %p132 = por %p130, %p131
      %p133 = scmp.ne.s32.totalorder %s125, %s127
      %p134 = scmp.eq.s32.totalorder %s19, 1
      %p135 = por %p133, %p134
      %p136 = scmp.ne.s32.totalorder %s127, %s128
      %p137 = scmp.eq.s32.totalorder %s19, 0
      %p138 = por %p136, %p137
      %p139 = scmp.ne.s32.totalorder %s127, %s128
      %p140 = scmp.eq.s32.totalorder %s20, 1
      %p141 = por %p139, %p140
      %p143 = scmp.ne.s32.totalorder %s128, %s142
      %p144 = scmp.eq.s32.totalorder %s20, 0
      %p145 = por %p143, %p144
      %s146 = ssub.s32 %s22, %s29
      %s147 = ssub.s32 %s21, %s33
      %s148 = sor.u32 %s146, %s147
      %p149 = scmp.eq.s32.totalorder %s148, 0
      %s151 = sadd.s32 %s150, 1
      %s152 = scalar_select %p149, %s150, %s151
      %p155 = pneg %p149
      %p156 = scmp.eq.s32.totalorder %s14, 1
      %p157 = por %p155, %p156
      %p158 = scmp.ne.s32.totalorder %s150, %s153
      %p159 = scmp.eq.s32.totalorder %s14, 0
      %p160 = por %p158, %p159
      %p161 = scmp.ne.s32.totalorder %s150, %s153
      %p162 = scmp.eq.s32.totalorder %s19, 1
      %p163 = por %p161, %p162
      %p164 = scmp.ne.s32.totalorder %s153, %s154
      %p165 = scmp.eq.s32.totalorder %s19, 0
      %p166 = por %p164, %p165
      %p167 = scmp.ne.s32.totalorder %s153, %s154
      %p168 = scmp.eq.s32.totalorder %s20, 1
      %p169 = por %p167, %p168
      %p171 = scmp.ne.s32.totalorder %s154, %s170
      %p172 = scmp.eq.s32.totalorder %s20, 0
      %p173 = por %p171, %p172
      %p174 = scmp.le.s32.totalorder 1, %s14
      %p175 = scmp.lt.s32.totalorder %s14, 3
      %p176 = pnand %p174, %p175
      %p177 = pneg %p176
      // Predicated region
      $region9: #{tpu_custom_call.1} parent=5 // pred_check
        _
      $region10: #{tpu_custom_call.1} parent=5 // pred_check_branch
        %179 = sbr.rel (%p176) target = $region12
      $region11: #{tpu_custom_call.1} parent=5 // pred_region
        %s180 = ssub.s32 %s14, 1
        // Predicated region
        $region13: #{tpu_custom_call.1} parent=11 // pred_check
          %p181 = pneg %p75
        $region14: #{tpu_custom_call.1} parent=11 // pred_check_branch
          %183 = sbr.rel (%p181) target = $region16
        $region15: #{tpu_custom_call.1} parent=11 // pred_region
          _
        $region16: #{tpu_custom_call.1} parent=11 // pred_fallthru
          _
        // Predicated region
        $region17: #{tpu_custom_call.1} parent=11 // pred_check
          %p184 = pneg %p96
        $region18: #{tpu_custom_call.1} parent=11 // pred_check_branch
          %186 = sbr.rel (%p184) target = $region20
        $region19: #{tpu_custom_call.1} parent=11 // pred_region
          _
        $region20: #{tpu_custom_call.1} parent=11 // pred_fallthru
          _
        // Predicated region
        $region21: #{tpu_custom_call.1} parent=11 // pred_check
          %p187 = pneg %p117
        $region22: #{tpu_custom_call.1} parent=11 // pred_check_branch
          %189 = sbr.rel (%p187) target = $region24
        $region23: #{tpu_custom_call.1} parent=11 // pred_region
          _
        $region24: #{tpu_custom_call.1} parent=11 // pred_fallthru
          _
        // Predicated region
        $region25: #{tpu_custom_call.1} parent=11 // pred_check
          %p190 = pneg %p138
        $region26: #{tpu_custom_call.1} parent=11 // pred_check_branch
          %192 = sbr.rel (%p190) target = $region28
        $region27: #{tpu_custom_call.1} parent=11 // pred_region
          _
        $region28: #{tpu_custom_call.1} parent=11 // pred_fallthru
          _
      $region12: #{tpu_custom_call.1} parent=5 // pred_fallthru
        _
      %p193 = scmp.lt.s32.totalorder %s14, 2
      // Predicated region
      $region29: #{tpu_custom_call.1} parent=5 // pred_check
        %p194 = pneg %p193
      $region30: #{tpu_custom_call.1} parent=5 // pred_check_branch
        %196 = sbr.rel (%p194) target = $region32
      $region31: #{tpu_custom_call.1} parent=5 // pred_region
        // Predicated region
        $region33: #{tpu_custom_call.1} parent=31 // pred_check
          %p197 = pneg %p48
        $region34: #{tpu_custom_call.1} parent=31 // pred_check_branch
          %199 = sbr.rel (%p197) target = $region36
        $region35: #{tpu_custom_call.1} parent=31 // pred_region
          %p200 = scmp.lt.s32.totalorder %s22, 1
          %s201 = scalar_select %p200, %s22, 1
          %p202 = scmp.lt.s32.totalorder %s21, 0
          %s203 = scalar_select %p202, %s21, 0
          %s204 = sadd.s32 %s203, %s201
          %s205 = smul.addr %s204, 4
          %s206 = scalar_lea.vmem %s0, %s205
        $region36: #{tpu_custom_call.1} parent=31 // pred_fallthru
          _
      $region32: #{tpu_custom_call.1} parent=5 // pred_fallthru
        _
      %p207 = scmp.le.s32.totalorder 1, %s14
      %p208 = scmp.lt.s32.totalorder %s14, 3
      %p209 = pnand %p207, %p208
      %p210 = pneg %p209
      // Predicated region
      $region37: #{tpu_custom_call.1} parent=5 // pred_check
        _
      $region38: #{tpu_custom_call.1} parent=5 // pred_check_branch
        %212 = sbr.rel (%p209) target = $region40
      $region39: #{tpu_custom_call.1} parent=5 // pred_region
        %s213 = ssub.s32 %s14, 1
        %p214 = scmp.lt.s32.totalorder %s24, 1
        %s215 = scalar_select %p214, %s24, 1
        %p216 = scmp.lt.s32.totalorder %s23, 0
        %s217 = scalar_select %p216, %s23, 0
        %s218 = sadd.s32 %s217, %s215
        %s219 = smul.addr %s218, 4
        %s220 = scalar_lea.vmem %s0, %s219
        %p221 = pneg %p54
        %p222 = pneg %p51
        %p223 = pneg %p75
        %p224 = pneg %p72
        %p225 = pneg %p96
        %p226 = pneg %p93
        %p227 = pneg %p117
        %p228 = pneg %p114
        %p229 = pneg %p138
        %p230 = pneg %p135
        %p231 = pneg %p166
        %p232 = pneg %p163
        %s233 = sand.u32 %s153, 1
        %s234 = scalar_lea.sflag [#allocation3], %s233
        %s235 = sand.u32 %s153, 1
        %s236 = smul.addr %s235, 4
        %s237 = scalar_lea.vmem [#allocation2], %s236
        %p238 = scmp.lt.s32.totalorder %s24, 1
        %s239 = scalar_select %p238, %s24, 1
        %p240 = scmp.lt.s32.totalorder %s23, 0
        %s241 = scalar_select %p240, %s23, 0
        %s242 = sadd.s32 %s241, %s239
        %s243 = smul.addr %s242, 4
        %s244 = scalar_lea.vmem %s0, %s243
        %v245 = vld [vmem:[%s1] sm:$0xff]
        %v246 = vld [vmem:[%s244] sm:$0xf]
        %248 = vset.pattern.permute.xlu0 0
        %249 = vperm.xlu0 %248, %v245
        %v250 = vpop.permute.xlu0 %249
        %v252 = vlaneseq
        %v253 = vshrl.u32 %v252, 7
        %v254 = vsub.s32 0, %v253
        %v255 = vrot.slane %v246, %v254
        %v256 = vmul.f32 %v250, %v255
        %257 = vset.pattern.permute.xlu0 1
        %258 = vperm.xlu0 %257, %v245
        %v259 = vpop.permute.xlu0 %258
        %v261 = vlaneseq
        %v262 = vshrl.u32 %v261, 7
        %v263 = vsub.s32 1, %v262
        %v264 = vrot.slane %v246, %v263
        %v265 = vmul.f32 %v259, %v264
        %v266 = vadd.f32 %v256, %v265
        %267 = vset.pattern.permute.xlu0 2
        %268 = vperm.xlu0 %267, %v245
        %v269 = vpop.permute.xlu0 %268
        %v271 = vlaneseq
        %v272 = vshrl.u32 %v271, 7
        %v273 = vsub.s32 2, %v272
        %v274 = vrot.slane %v246, %v273
        %v275 = vmul.f32 %v269, %v274
        %v276 = vadd.f32 %v266, %v275
        %277 = vset.pattern.permute.xlu0 3
        %278 = vperm.xlu0 %277, %v245
        %v279 = vpop.permute.xlu0 %278
        %v281 = vlaneseq
        %v282 = vshrl.u32 %v281, 7
        %v283 = vsub.s32 3, %v282
        %v284 = vrot.slane %v246, %v283
        %v285 = vmul.f32 %v279, %v284
        %v286 = vadd.f32 %v276, %v285
        %v287 = vld [vmem:[%s2] sm:$0xff]
        %289 = vset.pattern.permute.xlu0 0
        %290 = vperm.xlu0 %289, %v287
        %v291 = vpop.permute.xlu0 %290
        %v293 = vadd.f32 %v286, %v291
        %v294 = vmax.f32 %v293, 0.0
        %v295 = vld [vmem:[%s3] sm:$0xf]
        %297 = vset.pattern.permute.xlu0 0
        %298 = vperm.xlu0 %297, %v295
        %v299 = vpop.permute.xlu0 %298
        %v301 = vlaneseq
        %v302 = vshrl.u32 %v301, 7
        %v303 = vsub.s32 0, %v302
        %v304 = vrot.slane %v294, %v303
        %v305 = vmul.f32 %v299, %v304
        %306 = vset.pattern.permute.xlu0 1
        %307 = vperm.xlu0 %306, %v295
        %v308 = vpop.permute.xlu0 %307
        %v310 = vlaneseq
        %v311 = vshrl.u32 %v310, 7
        %v312 = vsub.s32 1, %v311
        %v313 = vrot.slane %v294, %v312
        %v314 = vmul.f32 %v308, %v313
        %v315 = vadd.f32 %v305, %v314
        %316 = vset.pattern.permute.xlu0 2
        %317 = vperm.xlu0 %316, %v295
        %v318 = vpop.permute.xlu0 %317
        %v320 = vlaneseq
        %v321 = vshrl.u32 %v320, 7
        %v322 = vsub.s32 2, %v321
        %v323 = vrot.slane %v294, %v322
        %v324 = vmul.f32 %v318, %v323
        %v325 = vadd.f32 %v315, %v324
        %326 = vset.pattern.permute.xlu0 3
        %327 = vperm.xlu0 %326, %v295
        %v328 = vpop.permute.xlu0 %327
        %v330 = vlaneseq
        %v331 = vshrl.u32 %v330, 7
        %v332 = vsub.s32 3, %v331
        %v333 = vrot.slane %v294, %v332
        %v334 = vmul.f32 %v328, %v333
        %v335 = vadd.f32 %v325, %v334
        %336 = vset.pattern.permute.xlu0 4
        %337 = vperm.xlu0 %336, %v295
        %v338 = vpop.permute.xlu0 %337
        %v340 = vlaneseq
        %v341 = vshrl.u32 %v340, 7
        %v342 = vsub.s32 4, %v341
        %v343 = vrot.slane %v294, %v342
        %v344 = vmul.f32 %v338, %v343
        %v345 = vadd.f32 %v335, %v344
        %346 = vset.pattern.permute.xlu0 5
        %347 = vperm.xlu0 %346, %v295
        %v348 = vpop.permute.xlu0 %347
        %v350 = vlaneseq
        %v351 = vshrl.u32 %v350, 7
        %v352 = vsub.s32 5, %v351
        %v353 = vrot.slane %v294, %v352
        %v354 = vmul.f32 %v348, %v353
        %v355 = vadd.f32 %v345, %v354
        %356 = vset.pattern.permute.xlu0 6
        %357 = vperm.xlu0 %356, %v295
        %v358 = vpop.permute.xlu0 %357
        %v360 = vlaneseq
        %v361 = vshrl.u32 %v360, 7
        %v362 = vsub.s32 6, %v361
        %v363 = vrot.slane %v294, %v362
        %v364 = vmul.f32 %v358, %v363
        %v365 = vadd.f32 %v355, %v364
        %366 = vset.pattern.permute.xlu0 7
        %367 = vperm.xlu0 %366, %v295
        %v368 = vpop.permute.xlu0 %367
        %v370 = vlaneseq
        %v371 = vshrl.u32 %v370, 7
        %v372 = vsub.s32 7, %v371
        %v373 = vrot.slane %v294, %v372
        %v374 = vmul.f32 %v368, %v373
        %v375 = vadd.f32 %v365, %v374
        %v376 = vld [vmem:[%s4] sm:$0xf]
        %378 = vset.pattern.permute.xlu0 0
        %379 = vperm.xlu0 %378, %v376
        %v380 = vpop.permute.xlu0 %379
        %v382 = vadd.f32 %v375, %v380
        %vm383 = vcmask 125952
        %384 = vst.msk [vmem:[%s237] sm:$0xf] %vm383, %v382
        %s385 = sand.u32 %s153, 1
        %s386 = scalar_lea.sflag [#allocation3], %s385
        %s387 = sand.u32 %s153, 1
        %s388 = smul.addr %s387, 4
        %s389 = scalar_lea.vmem [#allocation2], %s388
        // Predicated region
        $region41: #{tpu_custom_call.1} parent=39 // pred_check
          %p390 = pneg %p163
        $region42: #{tpu_custom_call.1} parent=39 // pred_check_branch
          %392 = sbr.rel (%p390) target = $region44
        $region43: #{tpu_custom_call.1} parent=39 // pred_region
          %s394 = ssub.s32 64, 64
          %395 = vsyncadd %s386, %s394
          %s396 = sadd.s32 %s23, %s24
          %s397 = smul.addr %s396, 64
          %s398 = scalar_lea.hbm %s5, %s397
          %s400 = sshll.u32 %s389, 4
          %s401 = int_to_ptr.vmem [resolvable:$true] %s400
          %403 = dma.vmem_to_hbm [thread:$0]  %s401, 64, %s398, %s386
        $region44: #{tpu_custom_call.1} parent=39 // pred_fallthru
          _
      $region40: #{tpu_custom_call.1} parent=5 // pred_fallthru
        _
      %p404 = scmp.le.s32.totalorder 2, %s14
      // Predicated region
      $region45: #{tpu_custom_call.1} parent=5 // pred_check
        %p405 = pneg %p404
      $region46: #{tpu_custom_call.1} parent=5 // pred_check_branch
        %407 = sbr.rel (%p405) target = $region48
      $region47: #{tpu_custom_call.1} parent=5 // pred_region
        %s408 = ssub.s32 %s14, 2
        // Predicated region
        $region49: #{tpu_custom_call.1} parent=47 // pred_check
          %p409 = pneg %p169
        $region50: #{tpu_custom_call.1} parent=47 // pred_check_branch
          %411 = sbr.rel (%p409) target = $region52
        $region51: #{tpu_custom_call.1} parent=47 // pred_region
          %s412 = sand.u32 %s154, 1
          %s413 = scalar_lea.sflag [#allocation3], %s412
          %s414 = sand.u32 %s154, 1
          %s415 = smul.addr %s414, 4
          %s416 = scalar_lea.vmem [#allocation2], %s415
          %417 = dma.done %s413, 64
        $region52: #{tpu_custom_call.1} parent=47 // pred_fallthru
          _
      $region48: #{tpu_custom_call.1} parent=5 // pred_fallthru
        _
    $region6: #{tpu_custom_call.1} parent=1 // loop_footer
      %s18 = sadd.s32 1, %s14
    $region7: #{tpu_custom_call.1} parent=1 // loop_footer_branch
      %13 = sbr.rel target = $region3
    $region8: #{tpu_custom_call.1} parent=1 // loop_exit
      _
    %418 = vsyncpa [#allocation3], 1
    %s419 = scalar_lea.sflag [#allocation3], 1
    %420 = vsyncpa %s419, 1

</llo_original>
